<compile_context>
chip_gen: v7x
topology: tpu7x:2x2x1
jax: 0.10.0
libtpu: 0.0.40
codegen_flags: <defaults>
</compile_context>

<pallas_src>
import jax
import jax.numpy as jnp
import numpy as np
from jax import lax
from jax.experimental import pallas as pl
from jax.experimental.pallas import tpu as pltpu


def _round_up(a, b):
    return (a + b - 1) // b * b


def mlp_kernel(x_ref, w1_ref, b1_ref, w2_ref, b2_ref, o_ref):
    hidden = w1_ref.shape[0]          # true hidden size (no padding needed)
    n_chunks = x_ref.shape[0] // 8    # 8-sublane chunks of the batch tile

    # Hoist all SMEM scalar parameter reads out of the chunk loop.
    params = [(w1_ref[j], b1_ref[j], w2_ref[j]) for j in range(hidden)]
    b2 = b2_ref[0]

    def chunk(ci, carry):
        r0 = pl.multiple_of(ci * 8, 8)
        x = x_ref[pl.ds(r0, 8), :]                        # (8, C) dense vregs
        acc = jnp.full(x.shape, b2, dtype=jnp.float32)    # output bias folded into init
        for (a, b, c) in params:                          # static unroll over H
            acc = acc + jnp.maximum(a * x + b, 0.0) * c   # fused relu + w2 accumulate
        o_ref[pl.ds(r0, 8), :] = acc                      # dense, unmasked store
        return carry

    lax.fori_loop(0, n_chunks, chunk, 0)


def simple_nn_forward(x, hidden_w, hidden_b, output_w, output_b,
                      *, lane_width=1024, max_tile_rows=256):
    """Forward pass of SimpleNN.

    x:        (N, 1) float32      (same layout as the PyTorch module)
    hidden_w: (H, 1)              nn.Linear(1, H).weight
    hidden_b: (H,)                nn.Linear(1, H).bias
    output_w: (1, H)              nn.Linear(H, 1).weight
    output_b: (1,)                nn.Linear(H, 1).bias
    returns:  (N, 1) float32
    """
    n = x.shape[0]
    hidden = hidden_w.shape[0]

    # Scalar parameters -> SMEM (true H, no sublane padding needed).
    w1 = hidden_w.astype(jnp.float32).reshape(hidden)
    b1 = hidden_b.astype(jnp.float32).reshape(hidden)
    w2 = output_w.astype(jnp.float32).reshape(hidden)
    b2 = output_b.astype(jnp.float32).reshape(1)

    # Dense 2D batch layout: C lanes (multiple of 128) x rows (multiple of 8 sublanes).
    c = min(lane_width, _round_up(n, 128))
    rows = pl.cdiv(n, c)
    rows8 = _round_up(rows, 8)
    if rows8 >= 16:
        # Keep tiles large but ensure >= 2 grid steps (megacore sharding on v7x).
        tile_r = min(max_tile_rows, max(8, (rows8 // 2) // 8 * 8))
    else:
        tile_r = rows8
    rows_pad = _round_up(rows8, tile_r)
    n_pad = rows_pad * c

    x_flat = x.astype(jnp.float32).reshape(n)
    if n_pad != n:                       # pad only when N is not already aligned
        x_flat = jnp.pad(x_flat, (0, n_pad - n))
    x2d = x_flat.reshape(rows_pad, c)

    out2d = pl.pallas_call(
        mlp_kernel,
        out_shape=jax.ShapeDtypeStruct((rows_pad, c), jnp.float32),
        grid=(rows_pad // tile_r,),
        in_specs=[
            pl.BlockSpec((tile_r, c), lambda i: (i, 0)),           # x tile (pipelined)
            pl.BlockSpec(memory_space=pltpu.MemorySpace.SMEM),     # w1 (H,)
            pl.BlockSpec(memory_space=pltpu.MemorySpace.SMEM),     # b1 (H,)
            pl.BlockSpec(memory_space=pltpu.MemorySpace.SMEM),     # w2 (H,)
            pl.BlockSpec(memory_space=pltpu.MemorySpace.SMEM),     # b2 (1,)
        ],
        out_specs=pl.BlockSpec((tile_r, c), lambda i: (i, 0)),     # dense, lane-aligned
        compiler_params=pltpu.CompilerParams(
            dimension_semantics=("parallel",)),                    # megacore on v7x
    )(x2d, w1, b1, w2, b2)

    out = out2d.reshape(n_pad)
    if n_pad != n:                       # slice only when padding was added
        out = out[:n]
    return out.reshape(n, 1)


def reference_forward(x, hidden_w, hidden_b, output_w, output_b):
    h = jnp.maximum(x @ hidden_w.T + hidden_b, 0.0)   # (N, H)
    return h @ output_w.T + output_b                  # (N, 1)


if __name__ == "__main__":
    HIDDEN = 32      # hidden_neurons

    key = jax.random.PRNGKey(0)
    kx, k1, kb1, k2, kb2 = jax.random.split(key, 5)

    # nn.Linear(1, H): weight (H, 1), bias (H,)
    hidden_w = jax.random.normal(k1, (HIDDEN, 1), dtype=jnp.float32) * 0.5
    hidden_b = jax.random.normal(kb1, (HIDDEN,), dtype=jnp.float32) * 0.1
    # nn.Linear(H, 1): weight (1, H), bias (1,)
    output_w = jax.random.normal(k2, (1, HIDDEN), dtype=jnp.float32) * 0.5
    output_b = jax.random.normal(kb2, (1,), dtype=jnp.float32) * 0.1

    # Two cases: ragged N (exercises the pad/slice path), and an aligned N that maps to
    # multiple row tiles (exercises the multi-step "parallel" grid, no padding).
    for n in (300, 16384):
        x = jax.random.normal(kx, (n, 1), dtype=jnp.float32)
        out = jax.block_until_ready(
            simple_nn_forward(x, hidden_w, hidden_b, output_w, output_b))
        ref = reference_forward(x, hidden_w, hidden_b, output_w, output_b)
        assert out.shape == (n, 1)
        np.testing.assert_allclose(np.asarray(out), np.asarray(ref),
                                   rtol=1e-5, atol=1e-5)

    print("KERNEL_OK")
</pallas_src>

<mosaic_0001>
module attributes {stable_mosaic.version = 11 : i64} {
  func.func @mlp_kernel(%arg0: i32, %arg1: memref<8x384xf32, #tpu.memory_space<vmem>>, %arg2: memref<32xf32, #tpu.memory_space<smem>>, %arg3: memref<32xf32, #tpu.memory_space<smem>>, %arg4: memref<32xf32, #tpu.memory_space<smem>>, %arg5: memref<1xf32, #tpu.memory_space<smem>>, %arg6: memref<8x384xf32, #tpu.memory_space<vmem>>) attributes {dimension_semantics = [#tpu.dimension_semantics<parallel>], iteration_bounds = array<i64: 1>, scalar_prefetch = 0 : i64, scratch_operands = 0 : i64, tpu.core_type = #tpu.core_type<tc>, window_params = [{transform_indices = @transform_0, window_bounds = array<i64: 8, 384>}, {transform_indices = @transform_1, window_bounds = array<i64: 32>}, {transform_indices = @transform_2, window_bounds = array<i64: 32>}, {transform_indices = @transform_3, window_bounds = array<i64: 32>}, {transform_indices = @transform_4, window_bounds = array<i64: 1>}, {transform_indices = @transform_5, window_bounds = array<i64: 8, 384>}]} {
    %c0 = arith.constant 0 : index
    %0 = memref.load %arg2[%c0] : memref<32xf32, #tpu.memory_space<smem>>
    %c0_0 = arith.constant 0 : index
    %1 = memref.load %arg3[%c0_0] : memref<32xf32, #tpu.memory_space<smem>>
    %c0_1 = arith.constant 0 : index
    %2 = memref.load %arg4[%c0_1] : memref<32xf32, #tpu.memory_space<smem>>
    %c1 = arith.constant 1 : index
    %3 = memref.load %arg2[%c1] : memref<32xf32, #tpu.memory_space<smem>>
    %c1_2 = arith.constant 1 : index
    %4 = memref.load %arg3[%c1_2] : memref<32xf32, #tpu.memory_space<smem>>
    %c1_3 = arith.constant 1 : index
    %5 = memref.load %arg4[%c1_3] : memref<32xf32, #tpu.memory_space<smem>>
    %c2 = arith.constant 2 : index
    %6 = memref.load %arg2[%c2] : memref<32xf32, #tpu.memory_space<smem>>
    %c2_4 = arith.constant 2 : index
    %7 = memref.load %arg3[%c2_4] : memref<32xf32, #tpu.memory_space<smem>>
    %c2_5 = arith.constant 2 : index
    %8 = memref.load %arg4[%c2_5] : memref<32xf32, #tpu.memory_space<smem>>
    %c3 = arith.constant 3 : index
    %9 = memref.load %arg2[%c3] : memref<32xf32, #tpu.memory_space<smem>>
    %c3_6 = arith.constant 3 : index
    %10 = memref.load %arg3[%c3_6] : memref<32xf32, #tpu.memory_space<smem>>
    %c3_7 = arith.constant 3 : index
    %11 = memref.load %arg4[%c3_7] : memref<32xf32, #tpu.memory_space<smem>>
    %c4 = arith.constant 4 : index
    %12 = memref.load %arg2[%c4] : memref<32xf32, #tpu.memory_space<smem>>
    %c4_8 = arith.constant 4 : index
    %13 = memref.load %arg3[%c4_8] : memref<32xf32, #tpu.memory_space<smem>>
    %c4_9 = arith.constant 4 : index
    %14 = memref.load %arg4[%c4_9] : memref<32xf32, #tpu.memory_space<smem>>
    %c5 = arith.constant 5 : index
    %15 = memref.load %arg2[%c5] : memref<32xf32, #tpu.memory_space<smem>>
    %c5_10 = arith.constant 5 : index
    %16 = memref.load %arg3[%c5_10] : memref<32xf32, #tpu.memory_space<smem>>
    %c5_11 = arith.constant 5 : index
    %17 = memref.load %arg4[%c5_11] : memref<32xf32, #tpu.memory_space<smem>>
    %c6 = arith.constant 6 : index
    %18 = memref.load %arg2[%c6] : memref<32xf32, #tpu.memory_space<smem>>
    %c6_12 = arith.constant 6 : index
    %19 = memref.load %arg3[%c6_12] : memref<32xf32, #tpu.memory_space<smem>>
    %c6_13 = arith.constant 6 : index
    %20 = memref.load %arg4[%c6_13] : memref<32xf32, #tpu.memory_space<smem>>
    %c7 = arith.constant 7 : index
    %21 = memref.load %arg2[%c7] : memref<32xf32, #tpu.memory_space<smem>>
    %c7_14 = arith.constant 7 : index
    %22 = memref.load %arg3[%c7_14] : memref<32xf32, #tpu.memory_space<smem>>
    %c7_15 = arith.constant 7 : index
    %23 = memref.load %arg4[%c7_15] : memref<32xf32, #tpu.memory_space<smem>>
    %c8 = arith.constant 8 : index
    %24 = memref.load %arg2[%c8] : memref<32xf32, #tpu.memory_space<smem>>
    %c8_16 = arith.constant 8 : index
    %25 = memref.load %arg3[%c8_16] : memref<32xf32, #tpu.memory_space<smem>>
    %c8_17 = arith.constant 8 : index
    %26 = memref.load %arg4[%c8_17] : memref<32xf32, #tpu.memory_space<smem>>
    %c9 = arith.constant 9 : index
    %27 = memref.load %arg2[%c9] : memref<32xf32, #tpu.memory_space<smem>>
    %c9_18 = arith.constant 9 : index
    %28 = memref.load %arg3[%c9_18] : memref<32xf32, #tpu.memory_space<smem>>
    %c9_19 = arith.constant 9 : index
    %29 = memref.load %arg4[%c9_19] : memref<32xf32, #tpu.memory_space<smem>>
    %c10 = arith.constant 10 : index
    %30 = memref.load %arg2[%c10] : memref<32xf32, #tpu.memory_space<smem>>
    %c10_20 = arith.constant 10 : index
    %31 = memref.load %arg3[%c10_20] : memref<32xf32, #tpu.memory_space<smem>>
    %c10_21 = arith.constant 10 : index
    %32 = memref.load %arg4[%c10_21] : memref<32xf32, #tpu.memory_space<smem>>
    %c11 = arith.constant 11 : index
    %33 = memref.load %arg2[%c11] : memref<32xf32, #tpu.memory_space<smem>>
    %c11_22 = arith.constant 11 : index
    %34 = memref.load %arg3[%c11_22] : memref<32xf32, #tpu.memory_space<smem>>
    %c11_23 = arith.constant 11 : index
    %35 = memref.load %arg4[%c11_23] : memref<32xf32, #tpu.memory_space<smem>>
    %c12 = arith.constant 12 : index
    %36 = memref.load %arg2[%c12] : memref<32xf32, #tpu.memory_space<smem>>
    %c12_24 = arith.constant 12 : index
    %37 = memref.load %arg3[%c12_24] : memref<32xf32, #tpu.memory_space<smem>>
    %c12_25 = arith.constant 12 : index
    %38 = memref.load %arg4[%c12_25] : memref<32xf32, #tpu.memory_space<smem>>
    %c13 = arith.constant 13 : index
    %39 = memref.load %arg2[%c13] : memref<32xf32, #tpu.memory_space<smem>>
    %c13_26 = arith.constant 13 : index
    %40 = memref.load %arg3[%c13_26] : memref<32xf32, #tpu.memory_space<smem>>
    %c13_27 = arith.constant 13 : index
    %41 = memref.load %arg4[%c13_27] : memref<32xf32, #tpu.memory_space<smem>>
    %c14 = arith.constant 14 : index
    %42 = memref.load %arg2[%c14] : memref<32xf32, #tpu.memory_space<smem>>
    %c14_28 = arith.constant 14 : index
    %43 = memref.load %arg3[%c14_28] : memref<32xf32, #tpu.memory_space<smem>>
    %c14_29 = arith.constant 14 : index
    %44 = memref.load %arg4[%c14_29] : memref<32xf32, #tpu.memory_space<smem>>
    %c15 = arith.constant 15 : index
    %45 = memref.load %arg2[%c15] : memref<32xf32, #tpu.memory_space<smem>>
    %c15_30 = arith.constant 15 : index
    %46 = memref.load %arg3[%c15_30] : memref<32xf32, #tpu.memory_space<smem>>
    %c15_31 = arith.constant 15 : index
    %47 = memref.load %arg4[%c15_31] : memref<32xf32, #tpu.memory_space<smem>>
    %c16 = arith.constant 16 : index
    %48 = memref.load %arg2[%c16] : memref<32xf32, #tpu.memory_space<smem>>
    %c16_32 = arith.constant 16 : index
    %49 = memref.load %arg3[%c16_32] : memref<32xf32, #tpu.memory_space<smem>>
    %c16_33 = arith.constant 16 : index
    %50 = memref.load %arg4[%c16_33] : memref<32xf32, #tpu.memory_space<smem>>
    %c17 = arith.constant 17 : index
    %51 = memref.load %arg2[%c17] : memref<32xf32, #tpu.memory_space<smem>>
    %c17_34 = arith.constant 17 : index
    %52 = memref.load %arg3[%c17_34] : memref<32xf32, #tpu.memory_space<smem>>
    %c17_35 = arith.constant 17 : index
    %53 = memref.load %arg4[%c17_35] : memref<32xf32, #tpu.memory_space<smem>>
    %c18 = arith.constant 18 : index
    %54 = memref.load %arg2[%c18] : memref<32xf32, #tpu.memory_space<smem>>
    %c18_36 = arith.constant 18 : index
    %55 = memref.load %arg3[%c18_36] : memref<32xf32, #tpu.memory_space<smem>>
    %c18_37 = arith.constant 18 : index
    %56 = memref.load %arg4[%c18_37] : memref<32xf32, #tpu.memory_space<smem>>
    %c19 = arith.constant 19 : index
    %57 = memref.load %arg2[%c19] : memref<32xf32, #tpu.memory_space<smem>>
    %c19_38 = arith.constant 19 : index
    %58 = memref.load %arg3[%c19_38] : memref<32xf32, #tpu.memory_space<smem>>
    %c19_39 = arith.constant 19 : index
    %59 = memref.load %arg4[%c19_39] : memref<32xf32, #tpu.memory_space<smem>>
    %c20 = arith.constant 20 : index
    %60 = memref.load %arg2[%c20] : memref<32xf32, #tpu.memory_space<smem>>
    %c20_40 = arith.constant 20 : index
    %61 = memref.load %arg3[%c20_40] : memref<32xf32, #tpu.memory_space<smem>>
    %c20_41 = arith.constant 20 : index
    %62 = memref.load %arg4[%c20_41] : memref<32xf32, #tpu.memory_space<smem>>
    %c21 = arith.constant 21 : index
    %63 = memref.load %arg2[%c21] : memref<32xf32, #tpu.memory_space<smem>>
    %c21_42 = arith.constant 21 : index
    %64 = memref.load %arg3[%c21_42] : memref<32xf32, #tpu.memory_space<smem>>
    %c21_43 = arith.constant 21 : index
    %65 = memref.load %arg4[%c21_43] : memref<32xf32, #tpu.memory_space<smem>>
    %c22 = arith.constant 22 : index
    %66 = memref.load %arg2[%c22] : memref<32xf32, #tpu.memory_space<smem>>
    %c22_44 = arith.constant 22 : index
    %67 = memref.load %arg3[%c22_44] : memref<32xf32, #tpu.memory_space<smem>>
    %c22_45 = arith.constant 22 : index
    %68 = memref.load %arg4[%c22_45] : memref<32xf32, #tpu.memory_space<smem>>
    %c23 = arith.constant 23 : index
    %69 = memref.load %arg2[%c23] : memref<32xf32, #tpu.memory_space<smem>>
    %c23_46 = arith.constant 23 : index
    %70 = memref.load %arg3[%c23_46] : memref<32xf32, #tpu.memory_space<smem>>
    %c23_47 = arith.constant 23 : index
    %71 = memref.load %arg4[%c23_47] : memref<32xf32, #tpu.memory_space<smem>>
    %c24 = arith.constant 24 : index
    %72 = memref.load %arg2[%c24] : memref<32xf32, #tpu.memory_space<smem>>
    %c24_48 = arith.constant 24 : index
    %73 = memref.load %arg3[%c24_48] : memref<32xf32, #tpu.memory_space<smem>>
    %c24_49 = arith.constant 24 : index
    %74 = memref.load %arg4[%c24_49] : memref<32xf32, #tpu.memory_space<smem>>
    %c25 = arith.constant 25 : index
    %75 = memref.load %arg2[%c25] : memref<32xf32, #tpu.memory_space<smem>>
    %c25_50 = arith.constant 25 : index
    %76 = memref.load %arg3[%c25_50] : memref<32xf32, #tpu.memory_space<smem>>
    %c25_51 = arith.constant 25 : index
    %77 = memref.load %arg4[%c25_51] : memref<32xf32, #tpu.memory_space<smem>>
    %c26 = arith.constant 26 : index
    %78 = memref.load %arg2[%c26] : memref<32xf32, #tpu.memory_space<smem>>
    %c26_52 = arith.constant 26 : index
    %79 = memref.load %arg3[%c26_52] : memref<32xf32, #tpu.memory_space<smem>>
    %c26_53 = arith.constant 26 : index
    %80 = memref.load %arg4[%c26_53] : memref<32xf32, #tpu.memory_space<smem>>
    %c27 = arith.constant 27 : index
    %81 = memref.load %arg2[%c27] : memref<32xf32, #tpu.memory_space<smem>>
    %c27_54 = arith.constant 27 : index
    %82 = memref.load %arg3[%c27_54] : memref<32xf32, #tpu.memory_space<smem>>
    %c27_55 = arith.constant 27 : index
    %83 = memref.load %arg4[%c27_55] : memref<32xf32, #tpu.memory_space<smem>>
    %c28 = arith.constant 28 : index
    %84 = memref.load %arg2[%c28] : memref<32xf32, #tpu.memory_space<smem>>
    %c28_56 = arith.constant 28 : index
    %85 = memref.load %arg3[%c28_56] : memref<32xf32, #tpu.memory_space<smem>>
    %c28_57 = arith.constant 28 : index
    %86 = memref.load %arg4[%c28_57] : memref<32xf32, #tpu.memory_space<smem>>
    %c29 = arith.constant 29 : index
    %87 = memref.load %arg2[%c29] : memref<32xf32, #tpu.memory_space<smem>>
    %c29_58 = arith.constant 29 : index
    %88 = memref.load %arg3[%c29_58] : memref<32xf32, #tpu.memory_space<smem>>
    %c29_59 = arith.constant 29 : index
    %89 = memref.load %arg4[%c29_59] : memref<32xf32, #tpu.memory_space<smem>>
    %c30 = arith.constant 30 : index
    %90 = memref.load %arg2[%c30] : memref<32xf32, #tpu.memory_space<smem>>
    %c30_60 = arith.constant 30 : index
    %91 = memref.load %arg3[%c30_60] : memref<32xf32, #tpu.memory_space<smem>>
    %c30_61 = arith.constant 30 : index
    %92 = memref.load %arg4[%c30_61] : memref<32xf32, #tpu.memory_space<smem>>
    %c31 = arith.constant 31 : index
    %93 = memref.load %arg2[%c31] : memref<32xf32, #tpu.memory_space<smem>>
    %c31_62 = arith.constant 31 : index
    %94 = memref.load %arg3[%c31_62] : memref<32xf32, #tpu.memory_space<smem>>
    %c31_63 = arith.constant 31 : index
    %95 = memref.load %arg4[%c31_63] : memref<32xf32, #tpu.memory_space<smem>>
    %c0_64 = arith.constant 0 : index
    %96 = memref.load %arg5[%c0_64] : memref<1xf32, #tpu.memory_space<smem>>
    %c0_i32 = arith.constant 0 : i32
    %c8_i32 = arith.constant 8 : i32
    %97 = arith.muli %c0_i32, %c8_i32 : i32
    %98 = tpu.assume_multiple %97, 8 : i32
    %99 = arith.index_cast %98 : i32 to index
    %c0_65 = arith.constant 0 : index
    %100 = vector.load %arg1[%99, %c0_65] : memref<8x384xf32, #tpu.memory_space<vmem>>, vector<8x384xf32>
    %101 = vector.broadcast %96 : f32 to vector<8x384xf32>
    %102 = vector.broadcast %0 : f32 to vector<8x384xf32>
    %103 = arith.mulf %102, %100 : vector<8x384xf32>
    %104 = vector.broadcast %1 : f32 to vector<8x384xf32>
    %105 = arith.addf %103, %104 : vector<8x384xf32>
    %cst = arith.constant 0.000000e+00 : f32
    %106 = vector.broadcast %cst : f32 to vector<8x384xf32>
    %107 = arith.maximumf %105, %106 : vector<8x384xf32>
    %108 = vector.broadcast %2 : f32 to vector<8x384xf32>
    %109 = arith.mulf %107, %108 : vector<8x384xf32>
    %110 = arith.addf %101, %109 : vector<8x384xf32>
    %111 = vector.broadcast %3 : f32 to vector<8x384xf32>
    %112 = arith.mulf %111, %100 : vector<8x384xf32>
    %113 = vector.broadcast %4 : f32 to vector<8x384xf32>
    %114 = arith.addf %112, %113 : vector<8x384xf32>
    %cst_66 = arith.constant 0.000000e+00 : f32
    %115 = vector.broadcast %cst_66 : f32 to vector<8x384xf32>
    %116 = arith.maximumf %114, %115 : vector<8x384xf32>
    %117 = vector.broadcast %5 : f32 to vector<8x384xf32>
    %118 = arith.mulf %116, %117 : vector<8x384xf32>
    %119 = arith.addf %110, %118 : vector<8x384xf32>
    %120 = vector.broadcast %6 : f32 to vector<8x384xf32>
    %121 = arith.mulf %120, %100 : vector<8x384xf32>
    %122 = vector.broadcast %7 : f32 to vector<8x384xf32>
    %123 = arith.addf %121, %122 : vector<8x384xf32>
    %cst_67 = arith.constant 0.000000e+00 : f32
    %124 = vector.broadcast %cst_67 : f32 to vector<8x384xf32>
    %125 = arith.maximumf %123, %124 : vector<8x384xf32>
    %126 = vector.broadcast %8 : f32 to vector<8x384xf32>
    %127 = arith.mulf %125, %126 : vector<8x384xf32>
    %128 = arith.addf %119, %127 : vector<8x384xf32>
    %129 = vector.broadcast %9 : f32 to vector<8x384xf32>
    %130 = arith.mulf %129, %100 : vector<8x384xf32>
    %131 = vector.broadcast %10 : f32 to vector<8x384xf32>
    %132 = arith.addf %130, %131 : vector<8x384xf32>
    %cst_68 = arith.constant 0.000000e+00 : f32
    %133 = vector.broadcast %cst_68 : f32 to vector<8x384xf32>
    %134 = arith.maximumf %132, %133 : vector<8x384xf32>
    %135 = vector.broadcast %11 : f32 to vector<8x384xf32>
    %136 = arith.mulf %134, %135 : vector<8x384xf32>
    %137 = arith.addf %128, %136 : vector<8x384xf32>
    %138 = vector.broadcast %12 : f32 to vector<8x384xf32>
    %139 = arith.mulf %138, %100 : vector<8x384xf32>
    %140 = vector.broadcast %13 : f32 to vector<8x384xf32>
    %141 = arith.addf %139, %140 : vector<8x384xf32>
    %cst_69 = arith.constant 0.000000e+00 : f32
    %142 = vector.broadcast %cst_69 : f32 to vector<8x384xf32>
    %143 = arith.maximumf %141, %142 : vector<8x384xf32>
    %144 = vector.broadcast %14 : f32 to vector<8x384xf32>
    %145 = arith.mulf %143, %144 : vector<8x384xf32>
    %146 = arith.addf %137, %145 : vector<8x384xf32>
    %147 = vector.broadcast %15 : f32 to vector<8x384xf32>
    %148 = arith.mulf %147, %100 : vector<8x384xf32>
    %149 = vector.broadcast %16 : f32 to vector<8x384xf32>
    %150 = arith.addf %148, %149 : vector<8x384xf32>
    %cst_70 = arith.constant 0.000000e+00 : f32
    %151 = vector.broadcast %cst_70 : f32 to vector<8x384xf32>
    %152 = arith.maximumf %150, %151 : vector<8x384xf32>
    %153 = vector.broadcast %17 : f32 to vector<8x384xf32>
    %154 = arith.mulf %152, %153 : vector<8x384xf32>
    %155 = arith.addf %146, %154 : vector<8x384xf32>
    %156 = vector.broadcast %18 : f32 to vector<8x384xf32>
    %157 = arith.mulf %156, %100 : vector<8x384xf32>
    %158 = vector.broadcast %19 : f32 to vector<8x384xf32>
    %159 = arith.addf %157, %158 : vector<8x384xf32>
    %cst_71 = arith.constant 0.000000e+00 : f32
    %160 = vector.broadcast %cst_71 : f32 to vector<8x384xf32>
    %161 = arith.maximumf %159, %160 : vector<8x384xf32>
    %162 = vector.broadcast %20 : f32 to vector<8x384xf32>
    %163 = arith.mulf %161, %162 : vector<8x384xf32>
    %164 = arith.addf %155, %163 : vector<8x384xf32>
    %165 = vector.broadcast %21 : f32 to vector<8x384xf32>
    %166 = arith.mulf %165, %100 : vector<8x384xf32>
    %167 = vector.broadcast %22 : f32 to vector<8x384xf32>
    %168 = arith.addf %166, %167 : vector<8x384xf32>
    %cst_72 = arith.constant 0.000000e+00 : f32
    %169 = vector.broadcast %cst_72 : f32 to vector<8x384xf32>
    %170 = arith.maximumf %168, %169 : vector<8x384xf32>
    %171 = vector.broadcast %23 : f32 to vector<8x384xf32>
    %172 = arith.mulf %170, %171 : vector<8x384xf32>
    %173 = arith.addf %164, %172 : vector<8x384xf32>
    %174 = vector.broadcast %24 : f32 to vector<8x384xf32>
    %175 = arith.mulf %174, %100 : vector<8x384xf32>
    %176 = vector.broadcast %25 : f32 to vector<8x384xf32>
    %177 = arith.addf %175, %176 : vector<8x384xf32>
    %cst_73 = arith.constant 0.000000e+00 : f32
    %178 = vector.broadcast %cst_73 : f32 to vector<8x384xf32>
    %179 = arith.maximumf %177, %178 : vector<8x384xf32>
    %180 = vector.broadcast %26 : f32 to vector<8x384xf32>
    %181 = arith.mulf %179, %180 : vector<8x384xf32>
    %182 = arith.addf %173, %181 : vector<8x384xf32>
    %183 = vector.broadcast %27 : f32 to vector<8x384xf32>
    %184 = arith.mulf %183, %100 : vector<8x384xf32>
    %185 = vector.broadcast %28 : f32 to vector<8x384xf32>
    %186 = arith.addf %184, %185 : vector<8x384xf32>
    %cst_74 = arith.constant 0.000000e+00 : f32
    %187 = vector.broadcast %cst_74 : f32 to vector<8x384xf32>
    %188 = arith.maximumf %186, %187 : vector<8x384xf32>
    %189 = vector.broadcast %29 : f32 to vector<8x384xf32>
    %190 = arith.mulf %188, %189 : vector<8x384xf32>
    %191 = arith.addf %182, %190 : vector<8x384xf32>
    %192 = vector.broadcast %30 : f32 to vector<8x384xf32>
    %193 = arith.mulf %192, %100 : vector<8x384xf32>
    %194 = vector.broadcast %31 : f32 to vector<8x384xf32>
    %195 = arith.addf %193, %194 : vector<8x384xf32>
    %cst_75 = arith.constant 0.000000e+00 : f32
    %196 = vector.broadcast %cst_75 : f32 to vector<8x384xf32>
    %197 = arith.maximumf %195, %196 : vector<8x384xf32>
    %198 = vector.broadcast %32 : f32 to vector<8x384xf32>
    %199 = arith.mulf %197, %198 : vector<8x384xf32>
    %200 = arith.addf %191, %199 : vector<8x384xf32>
    %201 = vector.broadcast %33 : f32 to vector<8x384xf32>
    %202 = arith.mulf %201, %100 : vector<8x384xf32>
    %203 = vector.broadcast %34 : f32 to vector<8x384xf32>
    %204 = arith.addf %202, %203 : vector<8x384xf32>
    %cst_76 = arith.constant 0.000000e+00 : f32
    %205 = vector.broadcast %cst_76 : f32 to vector<8x384xf32>
    %206 = arith.maximumf %204, %205 : vector<8x384xf32>
    %207 = vector.broadcast %35 : f32 to vector<8x384xf32>
    %208 = arith.mulf %206, %207 : vector<8x384xf32>
    %209 = arith.addf %200, %208 : vector<8x384xf32>
    %210 = vector.broadcast %36 : f32 to vector<8x384xf32>
    %211 = arith.mulf %210, %100 : vector<8x384xf32>
    %212 = vector.broadcast %37 : f32 to vector<8x384xf32>
    %213 = arith.addf %211, %212 : vector<8x384xf32>
    %cst_77 = arith.constant 0.000000e+00 : f32
    %214 = vector.broadcast %cst_77 : f32 to vector<8x384xf32>
    %215 = arith.maximumf %213, %214 : vector<8x384xf32>
    %216 = vector.broadcast %38 : f32 to vector<8x384xf32>
    %217 = arith.mulf %215, %216 : vector<8x384xf32>
    %218 = arith.addf %209, %217 : vector<8x384xf32>
    %219 = vector.broadcast %39 : f32 to vector<8x384xf32>
    %220 = arith.mulf %219, %100 : vector<8x384xf32>
    %221 = vector.broadcast %40 : f32 to vector<8x384xf32>
    %222 = arith.addf %220, %221 : vector<8x384xf32>
    %cst_78 = arith.constant 0.000000e+00 : f32
    %223 = vector.broadcast %cst_78 : f32 to vector<8x384xf32>
    %224 = arith.maximumf %222, %223 : vector<8x384xf32>
    %225 = vector.broadcast %41 : f32 to vector<8x384xf32>
    %226 = arith.mulf %224, %225 : vector<8x384xf32>
    %227 = arith.addf %218, %226 : vector<8x384xf32>
    %228 = vector.broadcast %42 : f32 to vector<8x384xf32>
    %229 = arith.mulf %228, %100 : vector<8x384xf32>
    %230 = vector.broadcast %43 : f32 to vector<8x384xf32>
    %231 = arith.addf %229, %230 : vector<8x384xf32>
    %cst_79 = arith.constant 0.000000e+00 : f32
    %232 = vector.broadcast %cst_79 : f32 to vector<8x384xf32>
    %233 = arith.maximumf %231, %232 : vector<8x384xf32>
    %234 = vector.broadcast %44 : f32 to vector<8x384xf32>
    %235 = arith.mulf %233, %234 : vector<8x384xf32>
    %236 = arith.addf %227, %235 : vector<8x384xf32>
    %237 = vector.broadcast %45 : f32 to vector<8x384xf32>
    %238 = arith.mulf %237, %100 : vector<8x384xf32>
    %239 = vector.broadcast %46 : f32 to vector<8x384xf32>
    %240 = arith.addf %238, %239 : vector<8x384xf32>
    %cst_80 = arith.constant 0.000000e+00 : f32
    %241 = vector.broadcast %cst_80 : f32 to vector<8x384xf32>
    %242 = arith.maximumf %240, %241 : vector<8x384xf32>
    %243 = vector.broadcast %47 : f32 to vector<8x384xf32>
    %244 = arith.mulf %242, %243 : vector<8x384xf32>
    %245 = arith.addf %236, %244 : vector<8x384xf32>
    %246 = vector.broadcast %48 : f32 to vector<8x384xf32>
    %247 = arith.mulf %246, %100 : vector<8x384xf32>
    %248 = vector.broadcast %49 : f32 to vector<8x384xf32>
    %249 = arith.addf %247, %248 : vector<8x384xf32>
    %cst_81 = arith.constant 0.000000e+00 : f32
    %250 = vector.broadcast %cst_81 : f32 to vector<8x384xf32>
    %251 = arith.maximumf %249, %250 : vector<8x384xf32>
    %252 = vector.broadcast %50 : f32 to vector<8x384xf32>
    %253 = arith.mulf %251, %252 : vector<8x384xf32>
    %254 = arith.addf %245, %253 : vector<8x384xf32>
    %255 = vector.broadcast %51 : f32 to vector<8x384xf32>
    %256 = arith.mulf %255, %100 : vector<8x384xf32>
    %257 = vector.broadcast %52 : f32 to vector<8x384xf32>
    %258 = arith.addf %256, %257 : vector<8x384xf32>
    %cst_82 = arith.constant 0.000000e+00 : f32
    %259 = vector.broadcast %cst_82 : f32 to vector<8x384xf32>
    %260 = arith.maximumf %258, %259 : vector<8x384xf32>
    %261 = vector.broadcast %53 : f32 to vector<8x384xf32>
    %262 = arith.mulf %260, %261 : vector<8x384xf32>
    %263 = arith.addf %254, %262 : vector<8x384xf32>
    %264 = vector.broadcast %54 : f32 to vector<8x384xf32>
    %265 = arith.mulf %264, %100 : vector<8x384xf32>
    %266 = vector.broadcast %55 : f32 to vector<8x384xf32>
    %267 = arith.addf %265, %266 : vector<8x384xf32>
    %cst_83 = arith.constant 0.000000e+00 : f32
    %268 = vector.broadcast %cst_83 : f32 to vector<8x384xf32>
    %269 = arith.maximumf %267, %268 : vector<8x384xf32>
    %270 = vector.broadcast %56 : f32 to vector<8x384xf32>
    %271 = arith.mulf %269, %270 : vector<8x384xf32>
    %272 = arith.addf %263, %271 : vector<8x384xf32>
    %273 = vector.broadcast %57 : f32 to vector<8x384xf32>
    %274 = arith.mulf %273, %100 : vector<8x384xf32>
    %275 = vector.broadcast %58 : f32 to vector<8x384xf32>
    %276 = arith.addf %274, %275 : vector<8x384xf32>
    %cst_84 = arith.constant 0.000000e+00 : f32
    %277 = vector.broadcast %cst_84 : f32 to vector<8x384xf32>
    %278 = arith.maximumf %276, %277 : vector<8x384xf32>
    %279 = vector.broadcast %59 : f32 to vector<8x384xf32>
    %280 = arith.mulf %278, %279 : vector<8x384xf32>
    %281 = arith.addf %272, %280 : vector<8x384xf32>
    %282 = vector.broadcast %60 : f32 to vector<8x384xf32>
    %283 = arith.mulf %282, %100 : vector<8x384xf32>
    %284 = vector.broadcast %61 : f32 to vector<8x384xf32>
    %285 = arith.addf %283, %284 : vector<8x384xf32>
    %cst_85 = arith.constant 0.000000e+00 : f32
    %286 = vector.broadcast %cst_85 : f32 to vector<8x384xf32>
    %287 = arith.maximumf %285, %286 : vector<8x384xf32>
    %288 = vector.broadcast %62 : f32 to vector<8x384xf32>
    %289 = arith.mulf %287, %288 : vector<8x384xf32>
    %290 = arith.addf %281, %289 : vector<8x384xf32>
    %291 = vector.broadcast %63 : f32 to vector<8x384xf32>
    %292 = arith.mulf %291, %100 : vector<8x384xf32>
    %293 = vector.broadcast %64 : f32 to vector<8x384xf32>
    %294 = arith.addf %292, %293 : vector<8x384xf32>
    %cst_86 = arith.constant 0.000000e+00 : f32
    %295 = vector.broadcast %cst_86 : f32 to vector<8x384xf32>
    %296 = arith.maximumf %294, %295 : vector<8x384xf32>
    %297 = vector.broadcast %65 : f32 to vector<8x384xf32>
    %298 = arith.mulf %296, %297 : vector<8x384xf32>
    %299 = arith.addf %290, %298 : vector<8x384xf32>
    %300 = vector.broadcast %66 : f32 to vector<8x384xf32>
    %301 = arith.mulf %300, %100 : vector<8x384xf32>
    %302 = vector.broadcast %67 : f32 to vector<8x384xf32>
    %303 = arith.addf %301, %302 : vector<8x384xf32>
    %cst_87 = arith.constant 0.000000e+00 : f32
    %304 = vector.broadcast %cst_87 : f32 to vector<8x384xf32>
    %305 = arith.maximumf %303, %304 : vector<8x384xf32>
    %306 = vector.broadcast %68 : f32 to vector<8x384xf32>
    %307 = arith.mulf %305, %306 : vector<8x384xf32>
    %308 = arith.addf %299, %307 : vector<8x384xf32>
    %309 = vector.broadcast %69 : f32 to vector<8x384xf32>
    %310 = arith.mulf %309, %100 : vector<8x384xf32>
    %311 = vector.broadcast %70 : f32 to vector<8x384xf32>
    %312 = arith.addf %310, %311 : vector<8x384xf32>
    %cst_88 = arith.constant 0.000000e+00 : f32
    %313 = vector.broadcast %cst_88 : f32 to vector<8x384xf32>
    %314 = arith.maximumf %312, %313 : vector<8x384xf32>
    %315 = vector.broadcast %71 : f32 to vector<8x384xf32>
    %316 = arith.mulf %314, %315 : vector<8x384xf32>
    %317 = arith.addf %308, %316 : vector<8x384xf32>
    %318 = vector.broadcast %72 : f32 to vector<8x384xf32>
    %319 = arith.mulf %318, %100 : vector<8x384xf32>
    %320 = vector.broadcast %73 : f32 to vector<8x384xf32>
    %321 = arith.addf %319, %320 : vector<8x384xf32>
    %cst_89 = arith.constant 0.000000e+00 : f32
    %322 = vector.broadcast %cst_89 : f32 to vector<8x384xf32>
    %323 = arith.maximumf %321, %322 : vector<8x384xf32>
    %324 = vector.broadcast %74 : f32 to vector<8x384xf32>
    %325 = arith.mulf %323, %324 : vector<8x384xf32>
    %326 = arith.addf %317, %325 : vector<8x384xf32>
    %327 = vector.broadcast %75 : f32 to vector<8x384xf32>
    %328 = arith.mulf %327, %100 : vector<8x384xf32>
    %329 = vector.broadcast %76 : f32 to vector<8x384xf32>
    %330 = arith.addf %328, %329 : vector<8x384xf32>
    %cst_90 = arith.constant 0.000000e+00 : f32
    %331 = vector.broadcast %cst_90 : f32 to vector<8x384xf32>
    %332 = arith.maximumf %330, %331 : vector<8x384xf32>
    %333 = vector.broadcast %77 : f32 to vector<8x384xf32>
    %334 = arith.mulf %332, %333 : vector<8x384xf32>
    %335 = arith.addf %326, %334 : vector<8x384xf32>
    %336 = vector.broadcast %78 : f32 to vector<8x384xf32>
    %337 = arith.mulf %336, %100 : vector<8x384xf32>
    %338 = vector.broadcast %79 : f32 to vector<8x384xf32>
    %339 = arith.addf %337, %338 : vector<8x384xf32>
    %cst_91 = arith.constant 0.000000e+00 : f32
    %340 = vector.broadcast %cst_91 : f32 to vector<8x384xf32>
    %341 = arith.maximumf %339, %340 : vector<8x384xf32>
    %342 = vector.broadcast %80 : f32 to vector<8x384xf32>
    %343 = arith.mulf %341, %342 : vector<8x384xf32>
    %344 = arith.addf %335, %343 : vector<8x384xf32>
    %345 = vector.broadcast %81 : f32 to vector<8x384xf32>
    %346 = arith.mulf %345, %100 : vector<8x384xf32>
    %347 = vector.broadcast %82 : f32 to vector<8x384xf32>
    %348 = arith.addf %346, %347 : vector<8x384xf32>
    %cst_92 = arith.constant 0.000000e+00 : f32
    %349 = vector.broadcast %cst_92 : f32 to vector<8x384xf32>
    %350 = arith.maximumf %348, %349 : vector<8x384xf32>
    %351 = vector.broadcast %83 : f32 to vector<8x384xf32>
    %352 = arith.mulf %350, %351 : vector<8x384xf32>
    %353 = arith.addf %344, %352 : vector<8x384xf32>
    %354 = vector.broadcast %84 : f32 to vector<8x384xf32>
    %355 = arith.mulf %354, %100 : vector<8x384xf32>
    %356 = vector.broadcast %85 : f32 to vector<8x384xf32>
    %357 = arith.addf %355, %356 : vector<8x384xf32>
    %cst_93 = arith.constant 0.000000e+00 : f32
    %358 = vector.broadcast %cst_93 : f32 to vector<8x384xf32>
    %359 = arith.maximumf %357, %358 : vector<8x384xf32>
    %360 = vector.broadcast %86 : f32 to vector<8x384xf32>
    %361 = arith.mulf %359, %360 : vector<8x384xf32>
    %362 = arith.addf %353, %361 : vector<8x384xf32>
    %363 = vector.broadcast %87 : f32 to vector<8x384xf32>
    %364 = arith.mulf %363, %100 : vector<8x384xf32>
    %365 = vector.broadcast %88 : f32 to vector<8x384xf32>
    %366 = arith.addf %364, %365 : vector<8x384xf32>
    %cst_94 = arith.constant 0.000000e+00 : f32
    %367 = vector.broadcast %cst_94 : f32 to vector<8x384xf32>
    %368 = arith.maximumf %366, %367 : vector<8x384xf32>
    %369 = vector.broadcast %89 : f32 to vector<8x384xf32>
    %370 = arith.mulf %368, %369 : vector<8x384xf32>
    %371 = arith.addf %362, %370 : vector<8x384xf32>
    %372 = vector.broadcast %90 : f32 to vector<8x384xf32>
    %373 = arith.mulf %372, %100 : vector<8x384xf32>
    %374 = vector.broadcast %91 : f32 to vector<8x384xf32>
    %375 = arith.addf %373, %374 : vector<8x384xf32>
    %cst_95 = arith.constant 0.000000e+00 : f32
    %376 = vector.broadcast %cst_95 : f32 to vector<8x384xf32>
    %377 = arith.maximumf %375, %376 : vector<8x384xf32>
    %378 = vector.broadcast %92 : f32 to vector<8x384xf32>
    %379 = arith.mulf %377, %378 : vector<8x384xf32>
    %380 = arith.addf %371, %379 : vector<8x384xf32>
    %381 = vector.broadcast %93 : f32 to vector<8x384xf32>
    %382 = arith.mulf %381, %100 : vector<8x384xf32>
    %383 = vector.broadcast %94 : f32 to vector<8x384xf32>
    %384 = arith.addf %382, %383 : vector<8x384xf32>
    %cst_96 = arith.constant 0.000000e+00 : f32
    %385 = vector.broadcast %cst_96 : f32 to vector<8x384xf32>
    %386 = arith.maximumf %384, %385 : vector<8x384xf32>
    %387 = vector.broadcast %95 : f32 to vector<8x384xf32>
    %388 = arith.mulf %386, %387 : vector<8x384xf32>
    %389 = arith.addf %380, %388 : vector<8x384xf32>
    %390 = arith.index_cast %98 : i32 to index
    %c0_97 = arith.constant 0 : index
    %391 = vector.load %arg6[%390, %c0_97] : memref<8x384xf32, #tpu.memory_space<vmem>>, vector<8x384xf32>
    tpu.vector_store %arg6[%390, %c0_97], %389 {strides = array<i32>} : memref<8x384xf32, #tpu.memory_space<vmem>>, vector<8x384xf32>,
    %c1_i32 = arith.constant 1 : i32
    return
  }
  func.func @transform_0(%arg0: i32) -> (i32, i32) {
    %c0_i32 = arith.constant 0 : i32
    %c0_i32_0 = arith.constant 0 : i32
    return %arg0, %c0_i32 : i32, i32
  }
  func.func @transform_1(%arg0: i32) -> i32 {
    %c0_i32 = arith.constant 0 : i32
    %c0_i32_0 = arith.constant 0 : i32
    return %c0_i32 : i32
  }
  func.func @transform_2(%arg0: i32) -> i32 {
    %c0_i32 = arith.constant 0 : i32
    %c0_i32_0 = arith.constant 0 : i32
    return %c0_i32 : i32
  }
  func.func @transform_3(%arg0: i32) -> i32 {
    %c0_i32 = arith.constant 0 : i32
    %c0_i32_0 = arith.constant 0 : i32
    return %c0_i32 : i32
  }
  func.func @transform_4(%arg0: i32) -> i32 {
    %c0_i32 = arith.constant 0 : i32
    %c0_i32_0 = arith.constant 0 : i32
    return %c0_i32 : i32
  }
  func.func @transform_5(%arg0: i32) -> (i32, i32) {
    %c0_i32 = arith.constant 0 : i32
    %c0_i32_0 = arith.constant 0 : i32
    return %arg0, %c0_i32 : i32, i32
  }
}

</mosaic_0001>

<llo_original>
// kernel: tpu_custom_call.1
$region0: #{tpu_custom_call.1}
  #allocation0 [shape = 'u32[]', space=smem, size = 0x4, offset = 0x4, fixed_abs, tag = 'smem constant byte address 0x4 - core index']
  #allocation1 [shape = 'u32[144,128]{1,0:T(1,128)}', space=vmem, size = 0x12000, scoped, tag = 'internal scratch']
  #allocation2 [shape = 'f32[1]{0:T(128)S(6)}', space=smem, size = 0x200, scoped, tag = 'scoped memory for tpu_custom_call.1']
  %s0 = inlined_call_operand.hbm [shape: f32[8,384], index: 0, kind: input, shape index: {}]
  %s1 = inlined_call_operand.vmem [shape: f32[32], index: 1, kind: input, shape index: {}]
  %s2 = inlined_call_operand.vmem [shape: f32[32], index: 2, kind: input, shape index: {}]
  %s3 = inlined_call_operand.vmem [shape: f32[32], index: 3, kind: input, shape index: {}]
  %s4 = inlined_call_operand.<no memory space> [shape: f32[1], index: 4, kind: input, shape index: {}]
  %s5 = inlined_call_operand.hbm [shape: f32[8,384], index: 5, kind: output, shape index: {}]
  %s6 = sld [smem:[#allocation0]]
  $region46: #{tpu_custom_call.1} parent=0
    _
  %s8 = ssub.s32 1, %s6
  %s9 = scalar_select 0, %s8, %s6
  %10 = sst [smem:[#allocation2]] %s4
  $region1: #{tpu_custom_call.1} parent=0
    #allocation3 [shape = 'u8[12288]{0}', space=vmem, size = 0x3000, scoped, tag = 'input window, operand 0, single buffered']
    #allocation4 [shape = 's32[1]{0}', space=sflag, size = 0x4, scoped, tag = 'scoped memory for tpu_custom_call.1']
    #allocation5 [shape = 's32[1]{0}', space=sflag, size = 0x4, scoped, tag = 'scoped memory for tpu_custom_call.1']
    #allocation6 [shape = 's32[1]{0}', space=sflag, size = 0x4, scoped, tag = 'scoped memory for tpu_custom_call.1']
    #allocation7 [shape = 'u8[512]{0}', space=smem, size = 0x200, scoped, tag = 'input window, operand 1, single buffered']
    #allocation8 [shape = 'u8[512]{0}', space=smem, size = 0x200, scoped, tag = 'input window, operand 2, single buffered']
    #allocation9 [shape = 's32[1]{0}', space=sflag, size = 0x4, scoped, tag = 'scoped memory for tpu_custom_call.1']
    #allocation10 [shape = 'u8[512]{0}', space=smem, size = 0x200, scoped, tag = 'input window, operand 3, single buffered']
    #allocation11 [shape = 'u8[12288]{0}', space=vmem, size = 0x3000, scoped, tag = 'output window, operand 0, single buffered']
    %11 = vsyncpa [#allocation4], 0
    %12 = vsyncpa [#allocation6], 0
    %13 = vsyncpa [#allocation9], 0
    %14 = vsyncpa [#allocation5], 0
    // Predicated region
    $region2: #{tpu_custom_call.1} parent=1 // pred_check
      _
    $region3: #{tpu_custom_call.1} parent=1 // pred_check_branch
      %16 = sbr.rel (0) target = $region5
    $region4: #{tpu_custom_call.1} parent=1 // pred_region
      %s18 = ssub.s32 384, 384
      %19 = vsyncadd [#allocation4], %s18
      %s21 = sshll.u32 [#allocation3], 4
      %s22 = int_to_ptr.vmem [resolvable:$true] %s21
      %24 = dma.hbm_to_vmem [thread:$0]  %s0, 384, %s22, [#allocation4]
    $region5: #{tpu_custom_call.1} parent=1 // pred_fallthru
      _
    // Predicated region
    $region6: #{tpu_custom_call.1} parent=1 // pred_check
      _
    $region7: #{tpu_custom_call.1} parent=1 // pred_check_branch
      %26 = sbr.rel (0) target = $region9
    $region8: #{tpu_custom_call.1} parent=1 // pred_region
      %s28 = ssub.s32 16, 16
      %29 = vsyncadd [#allocation6], %s28
      %s31 = sshll.u32 %s1, 4
      %s32 = int_to_ptr.vmem [resolvable:$true] %s31
      %34 = dma.vmem_to_smem %s32, 16, [#allocation7], [#allocation6]
    $region9: #{tpu_custom_call.1} parent=1 // pred_fallthru
      _
    // Predicated region
    $region10: #{tpu_custom_call.1} parent=1 // pred_check
      _
    $region11: #{tpu_custom_call.1} parent=1 // pred_check_branch
      %36 = sbr.rel (0) target = $region13
    $region12: #{tpu_custom_call.1} parent=1 // pred_region
      %s38 = ssub.s32 16, 16
      %39 = vsyncadd [#allocation9], %s38
      %s41 = sshll.u32 %s2, 4
      %s42 = int_to_ptr.vmem [resolvable:$true] %s41
      %44 = dma.vmem_to_smem %s42, 16, [#allocation8], [#allocation9]
    $region13: #{tpu_custom_call.1} parent=1 // pred_fallthru
      _
    // Predicated region
    $region14: #{tpu_custom_call.1} parent=1 // pred_check
      _
    $region15: #{tpu_custom_call.1} parent=1 // pred_check_branch
      %46 = sbr.rel (0) target = $region17
    $region16: #{tpu_custom_call.1} parent=1 // pred_region
      %s48 = ssub.s32 16, 16
      %49 = vsyncadd [#allocation9], %s48
      %s51 = sshll.u32 %s3, 4
      %s52 = int_to_ptr.vmem [resolvable:$true] %s51
      %54 = dma.vmem_to_smem %s52, 16, [#allocation10], [#allocation9]
    $region17: #{tpu_custom_call.1} parent=1 // pred_fallthru
      _
    // Predicated region
    $region18: #{tpu_custom_call.1} parent=1 // pred_check
      _
    $region19: #{tpu_custom_call.1} parent=1 // pred_check_branch
      %56 = sbr.rel (0) target = $region21
    $region20: #{tpu_custom_call.1} parent=1 // pred_region
      _
    $region21: #{tpu_custom_call.1} parent=1 // pred_fallthru
      _
    // Predicated region
    $region22: #{tpu_custom_call.1} parent=1 // pred_check
      _
    $region23: #{tpu_custom_call.1} parent=1 // pred_check_branch
      %58 = sbr.rel (0) target = $region25
    $region24: #{tpu_custom_call.1} parent=1 // pred_region
      %59 = dma.done [#allocation4], 384
    $region25: #{tpu_custom_call.1} parent=1 // pred_fallthru
      _
    // Predicated region
    $region26: #{tpu_custom_call.1} parent=1 // pred_check
      _
    $region27: #{tpu_custom_call.1} parent=1 // pred_check_branch
      %61 = sbr.rel (0) target = $region29
    $region28: #{tpu_custom_call.1} parent=1 // pred_region
      %62 = dma.done [#allocation6], 16
    $region29: #{tpu_custom_call.1} parent=1 // pred_fallthru
      _
    // Predicated region
    $region30: #{tpu_custom_call.1} parent=1 // pred_check
      _
    $region31: #{tpu_custom_call.1} parent=1 // pred_check_branch
      %64 = sbr.rel (0) target = $region33
    $region32: #{tpu_custom_call.1} parent=1 // pred_region
      %65 = dma.done [#allocation9], 16
    $region33: #{tpu_custom_call.1} parent=1 // pred_fallthru
      _
    // Predicated region
    $region34: #{tpu_custom_call.1} parent=1 // pred_check
      _
    $region35: #{tpu_custom_call.1} parent=1 // pred_check_branch
      %67 = sbr.rel (0) target = $region37
    $region36: #{tpu_custom_call.1} parent=1 // pred_region
      %68 = dma.done [#allocation9], 16
    $region37: #{tpu_custom_call.1} parent=1 // pred_fallthru
      _
    %69 = sfence
    %s70 = sld [smem:[#allocation7]]
    %s71 = sld [smem:[#allocation8]]
    %s72 = sld [smem:[#allocation10]]
    %s73 = sld [smem:[#allocation7 + $0x1]]
    %s74 = sld [smem:[#allocation8 + $0x1]]
    %s75 = sld [smem:[#allocation10 + $0x1]]
    %s76 = sld [smem:[#allocation7 + $0x2]]
    %s77 = sld [smem:[#allocation8 + $0x2]]
    %s78 = sld [smem:[#allocation10 + $0x2]]
    %s79 = sld [smem:[#allocation7 + $0x3]]
    %s80 = sld [smem:[#allocation8 + $0x3]]
    %s81 = sld [smem:[#allocation10 + $0x3]]
    %s82 = sld [smem:[#allocation7 + $0x4]]
    %s83 = sld [smem:[#allocation8 + $0x4]]
    %s84 = sld [smem:[#allocation10 + $0x4]]
    %s85 = sld [smem:[#allocation7 + $0x5]]
    %s86 = sld [smem:[#allocation8 + $0x5]]
    %s87 = sld [smem:[#allocation10 + $0x5]]
    %s88 = sld [smem:[#allocation7 + $0x6]]
    %s89 = sld [smem:[#allocation8 + $0x6]]
    %s90 = sld [smem:[#allocation10 + $0x6]]
    %s91 = sld [smem:[#allocation7 + $0x7]]
    %s92 = sld [smem:[#allocation8 + $0x7]]
    %s93 = sld [smem:[#allocation10 + $0x7]]
    %s94 = sld [smem:[#allocation7 + $0x8]]
    %s95 = sld [smem:[#allocation8 + $0x8]]
    %s96 = sld [smem:[#allocation10 + $0x8]]
    %s97 = sld [smem:[#allocation7 + $0x9]]
    %s98 = sld [smem:[#allocation8 + $0x9]]
    %s99 = sld [smem:[#allocation10 + $0x9]]
    %s100 = sld [smem:[#allocation7 + $0xa]]
    %s101 = sld [smem:[#allocation8 + $0xa]]
    %s102 = sld [smem:[#allocation10 + $0xa]]
    %s103 = sld [smem:[#allocation7 + $0xb]]
    %s104 = sld [smem:[#allocation8 + $0xb]]
    %s105 = sld [smem:[#allocation10 + $0xb]]
    %s106 = sld [smem:[#allocation7 + $0xc]]
    %s107 = sld [smem:[#allocation8 + $0xc]]
    %s108 = sld [smem:[#allocation10 + $0xc]]
    %s109 = sld [smem:[#allocation7 + $0xd]]
    %s110 = sld [smem:[#allocation8 + $0xd]]
    %s111 = sld [smem:[#allocation10 + $0xd]]
    %s112 = sld [smem:[#allocation7 + $0xe]]
    %s113 = sld [smem:[#allocation8 + $0xe]]
    %s114 = sld [smem:[#allocation10 + $0xe]]
    %s115 = sld [smem:[#allocation7 + $0xf]]
    %s116 = sld [smem:[#allocation8 + $0xf]]
    %s117 = sld [smem:[#allocation10 + $0xf]]
    %s118 = sld [smem:[#allocation7 + $0x10]]
    %s119 = sld [smem:[#allocation8 + $0x10]]
    %s120 = sld [smem:[#allocation10 + $0x10]]
    %s121 = sld [smem:[#allocation7 + $0x11]]
    %s122 = sld [smem:[#allocation8 + $0x11]]
    %s123 = sld [smem:[#allocation10 + $0x11]]
    %s124 = sld [smem:[#allocation7 + $0x12]]
    %s125 = sld [smem:[#allocation8 + $0x12]]
    %s126 = sld [smem:[#allocation10 + $0x12]]
    %s127 = sld [smem:[#allocation7 + $0x13]]
    %s128 = sld [smem:[#allocation8 + $0x13]]
    %s129 = sld [smem:[#allocation10 + $0x13]]
    %s130 = sld [smem:[#allocation7 + $0x14]]
    %s131 = sld [smem:[#allocation8 + $0x14]]
    %s132 = sld [smem:[#allocation10 + $0x14]]
    %s133 = sld [smem:[#allocation7 + $0x15]]
    %s134 = sld [smem:[#allocation8 + $0x15]]
    %s135 = sld [smem:[#allocation10 + $0x15]]
    %s136 = sld [smem:[#allocation7 + $0x16]]
    %s137 = sld [smem:[#allocation8 + $0x16]]
    %s138 = sld [smem:[#allocation10 + $0x16]]
    %s139 = sld [smem:[#allocation7 + $0x17]]
    %s140 = sld [smem:[#allocation8 + $0x17]]
    %s141 = sld [smem:[#allocation10 + $0x17]]
    %s142 = sld [smem:[#allocation7 + $0x18]]
    %s143 = sld [smem:[#allocation8 + $0x18]]
    %s144 = sld [smem:[#allocation10 + $0x18]]
    %s145 = sld [smem:[#allocation7 + $0x19]]
    %s146 = sld [smem:[#allocation8 + $0x19]]
    %s147 = sld [smem:[#allocation10 + $0x19]]
    %s148 = sld [smem:[#allocation7 + $0x1a]]
    %s149 = sld [smem:[#allocation8 + $0x1a]]
    %s150 = sld [smem:[#allocation10 + $0x1a]]
    %s151 = sld [smem:[#allocation7 + $0x1b]]
    %s152 = sld [smem:[#allocation8 + $0x1b]]
    %s153 = sld [smem:[#allocation10 + $0x1b]]
    %s154 = sld [smem:[#allocation7 + $0x1c]]
    %s155 = sld [smem:[#allocation8 + $0x1c]]
    %s156 = sld [smem:[#allocation10 + $0x1c]]
    %s157 = sld [smem:[#allocation7 + $0x1d]]
    %s158 = sld [smem:[#allocation8 + $0x1d]]
    %s159 = sld [smem:[#allocation10 + $0x1d]]
    %s160 = sld [smem:[#allocation7 + $0x1e]]
    %s161 = sld [smem:[#allocation8 + $0x1e]]
    %s162 = sld [smem:[#allocation10 + $0x1e]]
    %s163 = sld [smem:[#allocation7 + $0x1f]]
    %s164 = sld [smem:[#allocation8 + $0x1f]]
    %s165 = sld [smem:[#allocation10 + $0x1f]]
    %s166 = sld [smem:[#allocation2]]
    %s167 = smul.u32 0, 3
    %s168 = smul.addr %s167, 8
    %s169 = scalar_lea.vmem [#allocation3], %s168
    %v170 = vld [vmem:[%s169] sm:$0xff]
    %v171 = vld [vmem:[%s169 + $0x8] sm:$0xff]
    %v172 = vld [vmem:[%s169 + $0x10] sm:$0xff]
    %v173 = vstv %s166
    %v174 = vstv %s70
    %v175 = vmul.f32 %v174, %v170
    %v176 = vmul.f32 %v174, %v171
    %v177 = vmul.f32 %v174, %v172
    %v178 = vstv %s71
    %v179 = vadd.f32 %v175, %v178
    %v180 = vadd.f32 %v176, %v178
    %v181 = vadd.f32 %v177, %v178
    %v182 = vmax.f32 %v179, 0.0
    %v183 = vmax.f32 %v180, 0.0
    %v184 = vmax.f32 %v181, 0.0
    %v185 = vstv %s72
    %v186 = vmul.f32 %v182, %v185
    %v187 = vmul.f32 %v183, %v185
    %v188 = vmul.f32 %v184, %v185
    %v189 = vadd.f32 %v173, %v186
    %v190 = vadd.f32 %v173, %v187
    %v191 = vadd.f32 %v173, %v188
    %v192 = vstv %s73
    %v193 = vmul.f32 %v192, %v170
    %v194 = vmul.f32 %v192, %v171
    %v195 = vmul.f32 %v192, %v172
    %v196 = vstv %s74
    %v197 = vadd.f32 %v193, %v196
    %v198 = vadd.f32 %v194, %v196
    %v199 = vadd.f32 %v195, %v196
    %v200 = vmax.f32 %v197, 0.0
    %v201 = vmax.f32 %v198, 0.0
    %v202 = vmax.f32 %v199, 0.0
    %v203 = vstv %s75
    %v204 = vmul.f32 %v200, %v203
    %v205 = vmul.f32 %v201, %v203
    %v206 = vmul.f32 %v202, %v203
    %v207 = vadd.f32 %v189, %v204
    %v208 = vadd.f32 %v190, %v205
    %v209 = vadd.f32 %v191, %v206
    %v210 = vstv %s76
    %v211 = vmul.f32 %v210, %v170
    %v212 = vmul.f32 %v210, %v171
    %v213 = vmul.f32 %v210, %v172
    %v214 = vstv %s77
    %v215 = vadd.f32 %v211, %v214
    %v216 = vadd.f32 %v212, %v214
    %v217 = vadd.f32 %v213, %v214
    %v218 = vmax.f32 %v215, 0.0
    %v219 = vmax.f32 %v216, 0.0
    %v220 = vmax.f32 %v217, 0.0
    %v221 = vstv %s78
    %v222 = vmul.f32 %v218, %v221
    %v223 = vmul.f32 %v219, %v221
    %v224 = vmul.f32 %v220, %v221
    %v225 = vadd.f32 %v207, %v222
    %v226 = vadd.f32 %v208, %v223
    %v227 = vadd.f32 %v209, %v224
    %v228 = vstv %s79
    %v229 = vmul.f32 %v228, %v170
    %v230 = vmul.f32 %v228, %v171
    %v231 = vmul.f32 %v228, %v172
    %v232 = vstv %s80
    %v233 = vadd.f32 %v229, %v232
    %v234 = vadd.f32 %v230, %v232
    %v235 = vadd.f32 %v231, %v232
    %v236 = vmax.f32 %v233, 0.0
    %v237 = vmax.f32 %v234, 0.0
    %v238 = vmax.f32 %v235, 0.0
    %v239 = vstv %s81
    %v240 = vmul.f32 %v236, %v239
    %v241 = vmul.f32 %v237, %v239
    %v242 = vmul.f32 %v238, %v239
    %v243 = vadd.f32 %v225, %v240
    %v244 = vadd.f32 %v226, %v241
    %v245 = vadd.f32 %v227, %v242
    %v246 = vstv %s82
    %v247 = vmul.f32 %v246, %v170
    %v248 = vmul.f32 %v246, %v171
    %v249 = vmul.f32 %v246, %v172
    %v250 = vstv %s83
    %v251 = vadd.f32 %v247, %v250
    %v252 = vadd.f32 %v248, %v250
    %v253 = vadd.f32 %v249, %v250
    %v254 = vmax.f32 %v251, 0.0
    %v255 = vmax.f32 %v252, 0.0
    %v256 = vmax.f32 %v253, 0.0
    %v257 = vstv %s84
    %v258 = vmul.f32 %v254, %v257
    %v259 = vmul.f32 %v255, %v257
    %v260 = vmul.f32 %v256, %v257
    %v261 = vadd.f32 %v243, %v258
    %v262 = vadd.f32 %v244, %v259
    %v263 = vadd.f32 %v245, %v260
    %v264 = vstv %s85
    %v265 = vmul.f32 %v264, %v170
    %v266 = vmul.f32 %v264, %v171
    %v267 = vmul.f32 %v264, %v172
    %v268 = vstv %s86
    %v269 = vadd.f32 %v265, %v268
    %v270 = vadd.f32 %v266, %v268
    %v271 = vadd.f32 %v267, %v268
    %v272 = vmax.f32 %v269, 0.0
    %v273 = vmax.f32 %v270, 0.0
    %v274 = vmax.f32 %v271, 0.0
    %v275 = vstv %s87
    %v276 = vmul.f32 %v272, %v275
    %v277 = vmul.f32 %v273, %v275
    %v278 = vmul.f32 %v274, %v275
    %v279 = vadd.f32 %v261, %v276
    %v280 = vadd.f32 %v262, %v277
    %v281 = vadd.f32 %v263, %v278
    %v282 = vstv %s88
    %v283 = vmul.f32 %v282, %v170
    %v284 = vmul.f32 %v282, %v171
    %v285 = vmul.f32 %v282, %v172
    %v286 = vstv %s89
    %v287 = vadd.f32 %v283, %v286
    %v288 = vadd.f32 %v284, %v286
    %v289 = vadd.f32 %v285, %v286
    %v290 = vmax.f32 %v287, 0.0
    %v291 = vmax.f32 %v288, 0.0
    %v292 = vmax.f32 %v289, 0.0
    %v293 = vstv %s90
    %v294 = vmul.f32 %v290, %v293
    %v295 = vmul.f32 %v291, %v293
    %v296 = vmul.f32 %v292, %v293
    %v297 = vadd.f32 %v279, %v294
    %v298 = vadd.f32 %v280, %v295
    %v299 = vadd.f32 %v281, %v296
    %v300 = vstv %s91
    %v301 = vmul.f32 %v300, %v170
    %v302 = vmul.f32 %v300, %v171
    %v303 = vmul.f32 %v300, %v172
    %v304 = vstv %s92
    %v305 = vadd.f32 %v301, %v304
    %v306 = vadd.f32 %v302, %v304
    %v307 = vadd.f32 %v303, %v304
    %v308 = vmax.f32 %v305, 0.0
    %v309 = vmax.f32 %v306, 0.0
    %v310 = vmax.f32 %v307, 0.0
    %v311 = vstv %s93
    %v312 = vmul.f32 %v308, %v311
    %v313 = vmul.f32 %v309, %v311
    %v314 = vmul.f32 %v310, %v311
    %v315 = vadd.f32 %v297, %v312
    %v316 = vadd.f32 %v298, %v313
    %v317 = vadd.f32 %v299, %v314
    %v318 = vstv %s94
    %v319 = vmul.f32 %v318, %v170
    %v320 = vmul.f32 %v318, %v171
    %v321 = vmul.f32 %v318, %v172
    %v322 = vstv %s95
    %v323 = vadd.f32 %v319, %v322
    %v324 = vadd.f32 %v320, %v322
    %v325 = vadd.f32 %v321, %v322
    %v326 = vmax.f32 %v323, 0.0
    %v327 = vmax.f32 %v324, 0.0
    %v328 = vmax.f32 %v325, 0.0
    %v329 = vstv %s96
    %v330 = vmul.f32 %v326, %v329
    %v331 = vmul.f32 %v327, %v329
    %v332 = vmul.f32 %v328, %v329
    %v333 = vadd.f32 %v315, %v330
    %v334 = vadd.f32 %v316, %v331
    %v335 = vadd.f32 %v317, %v332
    %v336 = vstv %s97
    %v337 = vmul.f32 %v336, %v170
    %v338 = vmul.f32 %v336, %v171
    %v339 = vmul.f32 %v336, %v172
    %v340 = vstv %s98
    %v341 = vadd.f32 %v337, %v340
    %v342 = vadd.f32 %v338, %v340
    %v343 = vadd.f32 %v339, %v340
    %v344 = vmax.f32 %v341, 0.0
    %v345 = vmax.f32 %v342, 0.0
    %v346 = vmax.f32 %v343, 0.0
    %v347 = vstv %s99
    %v348 = vmul.f32 %v344, %v347
    %v349 = vmul.f32 %v345, %v347
    %v350 = vmul.f32 %v346, %v347
    %v351 = vadd.f32 %v333, %v348
    %v352 = vadd.f32 %v334, %v349
    %v353 = vadd.f32 %v335, %v350
    %v354 = vstv %s100
    %v355 = vmul.f32 %v354, %v170
    %v356 = vmul.f32 %v354, %v171
    %v357 = vmul.f32 %v354, %v172
    %v358 = vstv %s101
    %v359 = vadd.f32 %v355, %v358
    %v360 = vadd.f32 %v356, %v358
    %v361 = vadd.f32 %v357, %v358
    %v362 = vmax.f32 %v359, 0.0
    %v363 = vmax.f32 %v360, 0.0
    %v364 = vmax.f32 %v361, 0.0
    %v365 = vstv %s102
    %v366 = vmul.f32 %v362, %v365
    %v367 = vmul.f32 %v363, %v365
    %v368 = vmul.f32 %v364, %v365
    %v369 = vadd.f32 %v351, %v366
    %v370 = vadd.f32 %v352, %v367
    %v371 = vadd.f32 %v353, %v368
    %v372 = vstv %s103
    %v373 = vmul.f32 %v372, %v170
    %v374 = vmul.f32 %v372, %v171
    %v375 = vmul.f32 %v372, %v172
    %v376 = vstv %s104
    %v377 = vadd.f32 %v373, %v376
    %v378 = vadd.f32 %v374, %v376
    %v379 = vadd.f32 %v375, %v376
    %v380 = vmax.f32 %v377, 0.0
    %v381 = vmax.f32 %v378, 0.0
    %v382 = vmax.f32 %v379, 0.0
    %v383 = vstv %s105
    %v384 = vmul.f32 %v380, %v383
    %v385 = vmul.f32 %v381, %v383
    %v386 = vmul.f32 %v382, %v383
    %v387 = vadd.f32 %v369, %v384
    %v388 = vadd.f32 %v370, %v385
    %v389 = vadd.f32 %v371, %v386
    %v390 = vstv %s106
    %v391 = vmul.f32 %v390, %v170
    %v392 = vmul.f32 %v390, %v171
    %v393 = vmul.f32 %v390, %v172
    %v394 = vstv %s107
    %v395 = vadd.f32 %v391, %v394
    %v396 = vadd.f32 %v392, %v394
    %v397 = vadd.f32 %v393, %v394
    %v398 = vmax.f32 %v395, 0.0
    %v399 = vmax.f32 %v396, 0.0
    %v400 = vmax.f32 %v397, 0.0
    %v401 = vstv %s108
    %v402 = vmul.f32 %v398, %v401
    %v403 = vmul.f32 %v399, %v401
    %v404 = vmul.f32 %v400, %v401
    %v405 = vadd.f32 %v387, %v402
    %v406 = vadd.f32 %v388, %v403
    %v407 = vadd.f32 %v389, %v404
    %v408 = vstv %s109
    %v409 = vmul.f32 %v408, %v170
    %v410 = vmul.f32 %v408, %v171
    %v411 = vmul.f32 %v408, %v172
    %v412 = vstv %s110
    %v413 = vadd.f32 %v409, %v412
    %v414 = vadd.f32 %v410, %v412
    %v415 = vadd.f32 %v411, %v412
    %v416 = vmax.f32 %v413, 0.0
    %v417 = vmax.f32 %v414, 0.0
    %v418 = vmax.f32 %v415, 0.0
    %v419 = vstv %s111
    %v420 = vmul.f32 %v416, %v419
    %v421 = vmul.f32 %v417, %v419
    %v422 = vmul.f32 %v418, %v419
    %v423 = vadd.f32 %v405, %v420
    %v424 = vadd.f32 %v406, %v421
    %v425 = vadd.f32 %v407, %v422
    %v426 = vstv %s112
    %v427 = vmul.f32 %v426, %v170
    %v428 = vmul.f32 %v426, %v171
    %v429 = vmul.f32 %v426, %v172
    %v430 = vstv %s113
    %v431 = vadd.f32 %v427, %v430
    %v432 = vadd.f32 %v428, %v430
    %v433 = vadd.f32 %v429, %v430
    %v434 = vmax.f32 %v431, 0.0
    %v435 = vmax.f32 %v432, 0.0
    %v436 = vmax.f32 %v433, 0.0
    %v437 = vstv %s114
    %v438 = vmul.f32 %v434, %v437
    %v439 = vmul.f32 %v435, %v437
    %v440 = vmul.f32 %v436, %v437
    %v441 = vadd.f32 %v423, %v438
    %v442 = vadd.f32 %v424, %v439
    %v443 = vadd.f32 %v425, %v440
    %v444 = vstv %s115
    %v445 = vmul.f32 %v444, %v170
    %v446 = vmul.f32 %v444, %v171
    %v447 = vmul.f32 %v444, %v172
    %v448 = vstv %s116
    %v449 = vadd.f32 %v445, %v448
    %v450 = vadd.f32 %v446, %v448
    %v451 = vadd.f32 %v447, %v448
    %v452 = vmax.f32 %v449, 0.0
    %v453 = vmax.f32 %v450, 0.0
    %v454 = vmax.f32 %v451, 0.0
    %v455 = vstv %s117
    %v456 = vmul.f32 %v452, %v455
    %v457 = vmul.f32 %v453, %v455
    %v458 = vmul.f32 %v454, %v455
    %v459 = vadd.f32 %v441, %v456
    %v460 = vadd.f32 %v442, %v457
    %v461 = vadd.f32 %v443, %v458
    %v462 = vstv %s118
    %v463 = vmul.f32 %v462, %v170
    %v464 = vmul.f32 %v462, %v171
    %v465 = vmul.f32 %v462, %v172
    %v466 = vstv %s119
    %v467 = vadd.f32 %v463, %v466
    %v468 = vadd.f32 %v464, %v466
    %v469 = vadd.f32 %v465, %v466
    %v470 = vmax.f32 %v467, 0.0
    %v471 = vmax.f32 %v468, 0.0
    %v472 = vmax.f32 %v469, 0.0
    %v473 = vstv %s120
    %v474 = vmul.f32 %v470, %v473
    %v475 = vmul.f32 %v471, %v473
    %v476 = vmul.f32 %v472, %v473
    %v477 = vadd.f32 %v459, %v474
    %v478 = vadd.f32 %v460, %v475
    %v479 = vadd.f32 %v461, %v476
    %v480 = vstv %s121
    %v481 = vmul.f32 %v480, %v170
    %v482 = vmul.f32 %v480, %v171
    %v483 = vmul.f32 %v480, %v172
    %v484 = vstv %s122
    %v485 = vadd.f32 %v481, %v484
    %v486 = vadd.f32 %v482, %v484
    %v487 = vadd.f32 %v483, %v484
    %v488 = vmax.f32 %v485, 0.0
    %v489 = vmax.f32 %v486, 0.0
    %v490 = vmax.f32 %v487, 0.0
    %v491 = vstv %s123
    %v492 = vmul.f32 %v488, %v491
    %v493 = vmul.f32 %v489, %v491
    %v494 = vmul.f32 %v490, %v491
    %v495 = vadd.f32 %v477, %v492
    %v496 = vadd.f32 %v478, %v493
    %v497 = vadd.f32 %v479, %v494
    %v498 = vstv %s124
    %v499 = vmul.f32 %v498, %v170
    %v500 = vmul.f32 %v498, %v171
    %v501 = vmul.f32 %v498, %v172
    %v502 = vstv %s125
    %v503 = vadd.f32 %v499, %v502
    %v504 = vadd.f32 %v500, %v502
    %v505 = vadd.f32 %v501, %v502
    %v506 = vmax.f32 %v503, 0.0
    %v507 = vmax.f32 %v504, 0.0
    %v508 = vmax.f32 %v505, 0.0
    %v509 = vstv %s126
    %v510 = vmul.f32 %v506, %v509
    %v511 = vmul.f32 %v507, %v509
    %v512 = vmul.f32 %v508, %v509
    %v513 = vadd.f32 %v495, %v510
    %v514 = vadd.f32 %v496, %v511
    %v515 = vadd.f32 %v497, %v512
    %v516 = vstv %s127
    %v517 = vmul.f32 %v516, %v170
    %v518 = vmul.f32 %v516, %v171
    %v519 = vmul.f32 %v516, %v172
    %v520 = vstv %s128
    %v521 = vadd.f32 %v517, %v520
    %v522 = vadd.f32 %v518, %v520
    %v523 = vadd.f32 %v519, %v520
    %v524 = vmax.f32 %v521, 0.0
    %v525 = vmax.f32 %v522, 0.0
    %v526 = vmax.f32 %v523, 0.0
    %v527 = vstv %s129
    %v528 = vmul.f32 %v524, %v527
    %v529 = vmul.f32 %v525, %v527
    %v530 = vmul.f32 %v526, %v527
    %v531 = vadd.f32 %v513, %v528
    %v532 = vadd.f32 %v514, %v529
    %v533 = vadd.f32 %v515, %v530
    %v534 = vstv %s130
    %v535 = vmul.f32 %v534, %v170
    %v536 = vmul.f32 %v534, %v171
    %v537 = vmul.f32 %v534, %v172
    %v538 = vstv %s131
    %v539 = vadd.f32 %v535, %v538
    %v540 = vadd.f32 %v536, %v538
    %v541 = vadd.f32 %v537, %v538
    %v542 = vmax.f32 %v539, 0.0
    %v543 = vmax.f32 %v540, 0.0
    %v544 = vmax.f32 %v541, 0.0
    %v545 = vstv %s132
    %v546 = vmul.f32 %v542, %v545
    %v547 = vmul.f32 %v543, %v545
    %v548 = vmul.f32 %v544, %v545
    %v549 = vadd.f32 %v531, %v546
    %v550 = vadd.f32 %v532, %v547
    %v551 = vadd.f32 %v533, %v548
    %v552 = vstv %s133
    %v553 = vmul.f32 %v552, %v170
    %v554 = vmul.f32 %v552, %v171
    %v555 = vmul.f32 %v552, %v172
    %v556 = vstv %s134
    %v557 = vadd.f32 %v553, %v556
    %v558 = vadd.f32 %v554, %v556
    %v559 = vadd.f32 %v555, %v556
    %v560 = vmax.f32 %v557, 0.0
    %v561 = vmax.f32 %v558, 0.0
    %v562 = vmax.f32 %v559, 0.0
    %v563 = vstv %s135
    %v564 = vmul.f32 %v560, %v563
    %v565 = vmul.f32 %v561, %v563
    %v566 = vmul.f32 %v562, %v563
    %v567 = vadd.f32 %v549, %v564
    %v568 = vadd.f32 %v550, %v565
    %v569 = vadd.f32 %v551, %v566
    %v570 = vstv %s136
    %v571 = vmul.f32 %v570, %v170
    %v572 = vmul.f32 %v570, %v171
    %v573 = vmul.f32 %v570, %v172
    %v574 = vstv %s137
    %v575 = vadd.f32 %v571, %v574
    %v576 = vadd.f32 %v572, %v574
    %v577 = vadd.f32 %v573, %v574
    %v578 = vmax.f32 %v575, 0.0
    %v579 = vmax.f32 %v576, 0.0
    %v580 = vmax.f32 %v577, 0.0
    %v581 = vstv %s138
    %v582 = vmul.f32 %v578, %v581
    %v583 = vmul.f32 %v579, %v581
    %v584 = vmul.f32 %v580, %v581
    %v585 = vadd.f32 %v567, %v582
    %v586 = vadd.f32 %v568, %v583
    %v587 = vadd.f32 %v569, %v584
    %v588 = vstv %s139
    %v589 = vmul.f32 %v588, %v170
    %v590 = vmul.f32 %v588, %v171
    %v591 = vmul.f32 %v588, %v172
    %v592 = vstv %s140
    %v593 = vadd.f32 %v589, %v592
    %v594 = vadd.f32 %v590, %v592
    %v595 = vadd.f32 %v591, %v592
    %v596 = vmax.f32 %v593, 0.0
    %v597 = vmax.f32 %v594, 0.0
    %v598 = vmax.f32 %v595, 0.0
    %v599 = vstv %s141
    %v600 = vmul.f32 %v596, %v599
    %v601 = vmul.f32 %v597, %v599
    %v602 = vmul.f32 %v598, %v599
    %v603 = vadd.f32 %v585, %v600
    %v604 = vadd.f32 %v586, %v601
    %v605 = vadd.f32 %v587, %v602
    %v606 = vstv %s142
    %v607 = vmul.f32 %v606, %v170
    %v608 = vmul.f32 %v606, %v171
    %v609 = vmul.f32 %v606, %v172
    %v610 = vstv %s143
    %v611 = vadd.f32 %v607, %v610
    %v612 = vadd.f32 %v608, %v610
    %v613 = vadd.f32 %v609, %v610
    %v614 = vmax.f32 %v611, 0.0
    %v615 = vmax.f32 %v612, 0.0
    %v616 = vmax.f32 %v613, 0.0
    %v617 = vstv %s144
    %v618 = vmul.f32 %v614, %v617
    %v619 = vmul.f32 %v615, %v617
    %v620 = vmul.f32 %v616, %v617
    %v621 = vadd.f32 %v603, %v618
    %v622 = vadd.f32 %v604, %v619
    %v623 = vadd.f32 %v605, %v620
    %v624 = vstv %s145
    %v625 = vmul.f32 %v624, %v170
    %v626 = vmul.f32 %v624, %v171
    %v627 = vmul.f32 %v624, %v172
    %v628 = vstv %s146
    %v629 = vadd.f32 %v625, %v628
    %v630 = vadd.f32 %v626, %v628
    %v631 = vadd.f32 %v627, %v628
    %v632 = vmax.f32 %v629, 0.0
    %v633 = vmax.f32 %v630, 0.0
    %v634 = vmax.f32 %v631, 0.0
    %v635 = vstv %s147
    %v636 = vmul.f32 %v632, %v635
    %v637 = vmul.f32 %v633, %v635
    %v638 = vmul.f32 %v634, %v635
    %v639 = vadd.f32 %v621, %v636
    %v640 = vadd.f32 %v622, %v637
    %v641 = vadd.f32 %v623, %v638
    %v642 = vstv %s148
    %v643 = vmul.f32 %v642, %v170
    %v644 = vmul.f32 %v642, %v171
    %v645 = vmul.f32 %v642, %v172
    %v646 = vstv %s149
    %v647 = vadd.f32 %v643, %v646
    %v648 = vadd.f32 %v644, %v646
    %v649 = vadd.f32 %v645, %v646
    %v650 = vmax.f32 %v647, 0.0
    %v651 = vmax.f32 %v648, 0.0
    %v652 = vmax.f32 %v649, 0.0
    %v653 = vstv %s150
    %v654 = vmul.f32 %v650, %v653
    %v655 = vmul.f32 %v651, %v653
    %v656 = vmul.f32 %v652, %v653
    %v657 = vadd.f32 %v639, %v654
    %v658 = vadd.f32 %v640, %v655
    %v659 = vadd.f32 %v641, %v656
    %v660 = vstv %s151
    %v661 = vmul.f32 %v660, %v170
    %v662 = vmul.f32 %v660, %v171
    %v663 = vmul.f32 %v660, %v172
    %v664 = vstv %s152
    %v665 = vadd.f32 %v661, %v664
    %v666 = vadd.f32 %v662, %v664
    %v667 = vadd.f32 %v663, %v664
    %v668 = vmax.f32 %v665, 0.0
    %v669 = vmax.f32 %v666, 0.0
    %v670 = vmax.f32 %v667, 0.0
    %v671 = vstv %s153
    %v672 = vmul.f32 %v668, %v671
    %v673 = vmul.f32 %v669, %v671
    %v674 = vmul.f32 %v670, %v671
    %v675 = vadd.f32 %v657, %v672
    %v676 = vadd.f32 %v658, %v673
    %v677 = vadd.f32 %v659, %v674
    %v678 = vstv %s154
    %v679 = vmul.f32 %v678, %v170
    %v680 = vmul.f32 %v678, %v171
    %v681 = vmul.f32 %v678, %v172
    %v682 = vstv %s155
    %v683 = vadd.f32 %v679, %v682
    %v684 = vadd.f32 %v680, %v682
    %v685 = vadd.f32 %v681, %v682
    %v686 = vmax.f32 %v683, 0.0
    %v687 = vmax.f32 %v684, 0.0
    %v688 = vmax.f32 %v685, 0.0
    %v689 = vstv %s156
    %v690 = vmul.f32 %v686, %v689
    %v691 = vmul.f32 %v687, %v689
    %v692 = vmul.f32 %v688, %v689
    %v693 = vadd.f32 %v675, %v690
    %v694 = vadd.f32 %v676, %v691
    %v695 = vadd.f32 %v677, %v692
    %v696 = vstv %s157
    %v697 = vmul.f32 %v696, %v170
    %v698 = vmul.f32 %v696, %v171
    %v699 = vmul.f32 %v696, %v172
    %v700 = vstv %s158
    %v701 = vadd.f32 %v697, %v700
    %v702 = vadd.f32 %v698, %v700
    %v703 = vadd.f32 %v699, %v700
    %v704 = vmax.f32 %v701, 0.0
    %v705 = vmax.f32 %v702, 0.0
    %v706 = vmax.f32 %v703, 0.0
    %v707 = vstv %s159
    %v708 = vmul.f32 %v704, %v707
    %v709 = vmul.f32 %v705, %v707
    %v710 = vmul.f32 %v706, %v707
    %v711 = vadd.f32 %v693, %v708
    %v712 = vadd.f32 %v694, %v709
    %v713 = vadd.f32 %v695, %v710
    %v714 = vstv %s160
    %v715 = vmul.f32 %v714, %v170
    %v716 = vmul.f32 %v714, %v171
    %v717 = vmul.f32 %v714, %v172
    %v718 = vstv %s161
    %v719 = vadd.f32 %v715, %v718
    %v720 = vadd.f32 %v716, %v718
    %v721 = vadd.f32 %v717, %v718
    %v722 = vmax.f32 %v719, 0.0
    %v723 = vmax.f32 %v720, 0.0
    %v724 = vmax.f32 %v721, 0.0
    %v725 = vstv %s162
    %v726 = vmul.f32 %v722, %v725
    %v727 = vmul.f32 %v723, %v725
    %v728 = vmul.f32 %v724, %v725
    %v729 = vadd.f32 %v711, %v726
    %v730 = vadd.f32 %v712, %v727
    %v731 = vadd.f32 %v713, %v728
    %v732 = vstv %s163
    %v733 = vmul.f32 %v732, %v170
    %v734 = vmul.f32 %v732, %v171
    %v735 = vmul.f32 %v732, %v172
    %v736 = vstv %s164
    %v737 = vadd.f32 %v733, %v736
    %v738 = vadd.f32 %v734, %v736
    %v739 = vadd.f32 %v735, %v736
    %v740 = vmax.f32 %v737, 0.0
    %v741 = vmax.f32 %v738, 0.0
    %v742 = vmax.f32 %v739, 0.0
    %v743 = vstv %s165
    %v744 = vmul.f32 %v740, %v743
    %v745 = vmul.f32 %v741, %v743
    %v746 = vmul.f32 %v742, %v743
    %v747 = vadd.f32 %v729, %v744
    %v748 = vadd.f32 %v730, %v745
    %v749 = vadd.f32 %v731, %v746
    %s750 = smul.addr %s167, 8
    %s751 = scalar_lea.vmem [#allocation11], %s750
    %752 = vst [vmem:[%s751] sm:$0xff] %v747
    %753 = vst [vmem:[%s751 + $0x8] sm:$0xff] %v748
    %754 = vst [vmem:[%s751 + $0x10] sm:$0xff] %v749
    // Predicated region
    $region38: #{tpu_custom_call.1} parent=1 // pred_check
      _
    $region39: #{tpu_custom_call.1} parent=1 // pred_check_branch
      %756 = sbr.rel (0) target = $region41
    $region40: #{tpu_custom_call.1} parent=1 // pred_region
      %s758 = ssub.s32 384, 384
      %759 = vsyncadd [#allocation5], %s758
      %s761 = sshll.u32 [#allocation11], 4
      %s762 = int_to_ptr.vmem [resolvable:$true] %s761
      %764 = dma.vmem_to_hbm [thread:$0]  %s762, 384, %s5, [#allocation5]
    $region41: #{tpu_custom_call.1} parent=1 // pred_fallthru
      _
    // Predicated region
    $region42: #{tpu_custom_call.1} parent=1 // pred_check
      _
    $region43: #{tpu_custom_call.1} parent=1 // pred_check_branch
      %766 = sbr.rel (0) target = $region45
    $region44: #{tpu_custom_call.1} parent=1 // pred_region
      %767 = dma.done [#allocation5], 384
    $region45: #{tpu_custom_call.1} parent=1 // pred_fallthru
      _
    %768 = vsyncpa [#allocation4], 1
    %769 = vsyncpa [#allocation5], 1
    %770 = vsyncpa [#allocation6], 1
    %771 = vsyncpa [#allocation9], 1

</llo_original>
